<compile_context>
chip_gen: v7x
topology: tpu7x:2x2x1
jax: 0.10.0
libtpu: 0.0.40
codegen_flags: <defaults>
</compile_context>

<pallas_src>
import functools
import math

import jax
import jax.numpy as jnp
from jax import lax
from jax.experimental import pallas as pl
from jax.experimental.pallas import tpu as pltpu


def _round_up(a: int, b: int) -> int:
    return (a + b - 1) // b * b


# ---------------------------------------------------------------------------
# Path 1: small problem (module-native shapes) -> single VMEM-resident block.
# Kept in f32: it is launch/DMA-overhead bound, not MXU bound, and the tight
# accuracy matters more than matmul rate at these sizes.
# ---------------------------------------------------------------------------
def _attn_single_block_kernel(x_ref, wq_ref, wk_ref, wv_ref, o_ref, *, scale):
    x = x_ref[...]                                                   # (S, d_in)
    # Scale Q (S*d_out mults) instead of the (S,S) scores.
    q = jnp.dot(x, wq_ref[...], preferred_element_type=jnp.float32) * scale
    k = jnp.dot(x, wk_ref[...], preferred_element_type=jnp.float32)
    v = jnp.dot(x, wv_ref[...], preferred_element_type=jnp.float32)

    # QK^T via dot_general contracting the last dim of both operands.
    s = lax.dot_general(q, k, dimension_numbers=(((1,), (1,)), ((), ())),
                        preferred_element_type=jnp.float32)          # (S, S)
    m = jnp.max(s, axis=-1, keepdims=True)
    p = jnp.exp(s - m)
    denom = jnp.sum(p, axis=-1, keepdims=True)
    ctx = jnp.dot(p, v, preferred_element_type=jnp.float32)          # (S, d_out)
    # Normalize AFTER the PV matmul (S*d_out divides, not S*S multiplies).
    o_ref[...] = (ctx / denom).astype(o_ref.dtype)


def _attention_single_block(x, w_query, w_key, w_value, scale):
    s, d_in = x.shape
    d_out = w_key.shape[1]
    flops = 3 * 2 * s * d_in * d_out + 2 * 2 * s * s * d_out
    bytes_accessed = 4 * (s * d_in + 3 * d_in * d_out + s * d_out)
    kernel = functools.partial(_attn_single_block_kernel, scale=scale)
    return pl.pallas_call(
        kernel,
        out_shape=jax.ShapeDtypeStruct((s, d_out), x.dtype),
        in_specs=[pl.BlockSpec(memory_space=pltpu.MemorySpace.VMEM)] * 4,
        out_specs=pl.BlockSpec(memory_space=pltpu.MemorySpace.VMEM),
        cost_estimate=pl.CostEstimate(
            flops=flops, transcendentals=s * s, bytes_accessed=bytes_accessed),
    )(x, w_query, w_key, w_value)


# ---------------------------------------------------------------------------
# Path 2: larger S -> flash-style tiled kernel with online softmax.
#   grid = (Sq_pad // block_q, Sk_pad // block_k)
#   query axis "parallel" (>= 2 blocks -> both v7x TensorCores), kv "arbitrary".
#   Inputs: x_q tile (bf16), Wq (bf16), precomputed K^T tile (bf16), V tile (bf16).
# ---------------------------------------------------------------------------
def _attn_flash_kernel(xq_ref, wq_ref, kT_ref, v_ref, o_ref,
                       q_sc, m_sc, l_sc, acc_sc,
                       *, scale, seq_len, block_k, mask_kv):
    ki = pl.program_id(1)

    @pl.when(ki == 0)
    def _():
        # Q projection hoisted out of the kv loop: once per q-block, bf16 in,
        # f32 accumulate, scaled, stored back to bf16 scratch for the MXU.
        q = jnp.dot(xq_ref[...], wq_ref[...],
                    preferred_element_type=jnp.float32) * scale      # (tq, d_out)
        q_sc[...] = q.astype(q_sc.dtype)
        m_sc[...] = jnp.full_like(m_sc, -jnp.inf)
        l_sc[...] = jnp.zeros_like(l_sc)
        acc_sc[...] = jnp.zeros_like(acc_sc)

    # QK^T as a plain NN matmul (K pre-transposed in the wrapper), bf16 -> f32.
    s = jnp.dot(q_sc[...], kT_ref[...],
                preferred_element_type=jnp.float32)                  # (tq, tk)

    if mask_kv:
        kv_idx = ki * block_k + lax.broadcasted_iota(jnp.int32, s.shape, 1)
        s = jnp.where(kv_idx < seq_len, s, jnp.float32(-1e30))

    m_prev = m_sc[...]
    m_new = jnp.maximum(m_prev, jnp.max(s, axis=-1, keepdims=True))
    alpha = jnp.exp(m_prev - m_new)
    p = jnp.exp(s - m_new)                                           # f32
    l_sc[...] = alpha * l_sc[...] + jnp.sum(p, axis=-1, keepdims=True)
    acc_sc[...] = alpha * acc_sc[...] + jnp.dot(
        p.astype(v_ref.dtype), v_ref[...],                           # bf16 MXU
        preferred_element_type=jnp.float32)
    m_sc[...] = m_new

    @pl.when(ki == pl.num_programs(1) - 1)
    def _():
        # Exact division in the once-per-q-block finalize (accuracy; cheap).
        o_ref[...] = (acc_sc[...] / l_sc[...]).astype(o_ref.dtype)


def _attention_flash(x, w_query, w_key, w_value, scale, block_q, block_k):
    s_len, d_in = x.shape
    d_out = w_key.shape[1]

    # Block-size hygiene: multiples of 128, capped to the (rounded) sequence.
    block_q = max(128, min(block_q, _round_up(s_len, 128)))
    # Keep >= 2 query blocks so both v7x TensorCores get work (no-op elsewhere).
    block_q = min(block_q, _round_up(pl.cdiv(s_len, 2), 128))
    block_k = max(128, min(block_k, _round_up(s_len, 128)))

    sq_pad = _round_up(s_len, block_q)
    sk_pad = _round_up(s_len, block_k)
    mask_kv = sk_pad != s_len

    # Precompute K^T and V ONCE (plain XLA matmuls; negligible vs. attention),
    # then cast everything feeding the MXU to bf16 (f32 accumulation in-kernel).
    k = jnp.dot(x, w_key, preferred_element_type=jnp.float32)        # (S, d_out)
    v = jnp.dot(x, w_value, preferred_element_type=jnp.float32)      # (S, d_out)
    kT = k.T                                                         # (d_out, S)
    if mask_kv:
        kT = jnp.pad(kT, ((0, 0), (0, sk_pad - s_len)))
        v = jnp.pad(v, ((0, sk_pad - s_len), (0, 0)))
    xq = x if sq_pad == s_len else jnp.pad(x, ((0, sq_pad - s_len), (0, 0)))

    xq = xq.astype(jnp.bfloat16)
    wq = w_query.astype(jnp.bfloat16)
    kT = kT.astype(jnp.bfloat16)
    v = v.astype(jnp.bfloat16)

    grid = (sq_pad // block_q, sk_pad // block_k)

    flops = (2 * sq_pad * d_in * d_out                 # Q projection (in-kernel)
             + 2 * 2 * sq_pad * sk_pad * d_out)        # QK^T + PV
    bytes_accessed = (2 * (sq_pad * d_in + d_in * d_out
                           + d_out * sk_pad + sk_pad * d_out)
                      + 4 * sq_pad * d_out)
    kernel = functools.partial(
        _attn_flash_kernel, scale=scale, seq_len=s_len,
        block_k=block_k, mask_kv=mask_kv)

    out = pl.pallas_call(
        kernel,
        out_shape=jax.ShapeDtypeStruct((sq_pad, d_out), x.dtype),
        grid_spec=pltpu.PrefetchScalarGridSpec(
            num_scalar_prefetch=0,
            grid=grid,
            in_specs=[
                pl.BlockSpec((block_q, d_in), lambda qi, ki: (qi, 0)),   # x rows (Q)
                pl.BlockSpec((d_in, d_out), lambda qi, ki: (0, 0)),      # Wq
                pl.BlockSpec((d_out, block_k), lambda qi, ki: (0, ki)),  # K^T tile
                pl.BlockSpec((block_k, d_out), lambda qi, ki: (ki, 0)),  # V tile
            ],
            out_specs=pl.BlockSpec((block_q, d_out), lambda qi, ki: (qi, 0)),
            scratch_shapes=[
                pltpu.VMEM((block_q, d_out), jnp.bfloat16),  # Q (hoisted, scaled)
                pltpu.VMEM((block_q, 1), jnp.float32),       # running max
                pltpu.VMEM((block_q, 1), jnp.float32),       # running denom
                pltpu.VMEM((block_q, d_out), jnp.float32),   # accumulator
            ],
        ),
        compiler_params=pltpu.CompilerParams(
            dimension_semantics=("parallel", "arbitrary"),
        ),
        cost_estimate=pl.CostEstimate(
            flops=flops, transcendentals=sq_pad * sk_pad,
            bytes_accessed=bytes_accessed),
    )(xq, wq, kT, v)

    if sq_pad != s_len:
        out = out[:s_len]
    return out


def self_attention_v1(x, w_query, w_key, w_value, *, block_q=256, block_k=512):
    """Pallas forward pass of SelfAttention_v1.

    x: (S, d_in); W_*: (d_in, d_out)  ->  (S, d_out)
    """
    s_len, _ = x.shape
    d_out = w_key.shape[1]
    scale = 1.0 / math.sqrt(float(d_out))
    if s_len <= 256:
        # Module-native tiny shapes: whole problem in one VMEM block, f32.
        return _attention_single_block(x, w_query, w_key, w_value, scale)
    # Large S: always tiled (padded + masked if S isn't a block multiple),
    # never an (S,S) score matrix in VMEM.
    return _attention_flash(x, w_query, w_key, w_value, scale, block_q, block_k)


def _reference(x, w_query, w_key, w_value):
    keys = x @ w_key
    queries = x @ w_query
    values = x @ w_value
    scores = queries @ keys.T
    weights = jax.nn.softmax(scores / (keys.shape[-1] ** 0.5), axis=-1)
    return weights @ values


if __name__ == "__main__":
    # ---- Test 1: module's native small shapes (single-block path, f32) -----
    context_length, d_in, d_out = 8, 32, 16
    key = jax.random.PRNGKey(0)
    kx, kq, kk, kv = jax.random.split(key, 4)
    # torch.rand(...) is uniform [0, 1) -- mirror that deterministically.
    x = jax.random.uniform(kx, (context_length, d_in), dtype=jnp.float32)
    w_query = jax.random.uniform(kq, (d_in, d_out), dtype=jnp.float32)
    w_key = jax.random.uniform(kk, (d_in, d_out), dtype=jnp.float32)
    w_value = jax.random.uniform(kv, (d_in, d_out), dtype=jnp.float32)

    out = jax.block_until_ready(self_attention_v1(x, w_query, w_key, w_value))
    ref = _reference(x, w_query, w_key, w_value)
    assert out.shape == (context_length, d_out)
    assert jnp.allclose(out, ref, atol=1e-3, rtol=1e-3), "small-path mismatch"

    # ---- Test 2: larger S exercises the tiled flash path (bf16 MXU feed) ---
    s2, din2, dout2 = 512, 64, 128
    key2 = jax.random.PRNGKey(1)
    kx2, kq2, kk2, kv2 = jax.random.split(key2, 4)
    x2 = jax.random.normal(kx2, (s2, din2), dtype=jnp.float32)
    wq2 = jax.random.normal(kq2, (din2, dout2), dtype=jnp.float32) / math.sqrt(din2)
    wk2 = jax.random.normal(kk2, (din2, dout2), dtype=jnp.float32) / math.sqrt(din2)
    wv2 = jax.random.normal(kv2, (din2, dout2), dtype=jnp.float32) / math.sqrt(din2)

    out2 = jax.block_until_ready(self_attention_v1(x2, wq2, wk2, wv2))
    ref2 = _reference(x2, wq2, wk2, wv2)
    assert out2.shape == (s2, dout2)
    assert jnp.allclose(out2, ref2, atol=1e-2, rtol=1e-2), "flash-path mismatch"

    # ---- Test 3: S not a block multiple -> padded + masked flash path ------
    s3 = 300
    key3 = jax.random.PRNGKey(2)
    kx3, kq3, kk3, kv3 = jax.random.split(key3, 4)
    x3 = jax.random.normal(kx3, (s3, din2), dtype=jnp.float32)
    wq3 = jax.random.normal(kq3, (din2, dout2), dtype=jnp.float32) / math.sqrt(din2)
    wk3 = jax.random.normal(kk3, (din2, dout2), dtype=jnp.float32) / math.sqrt(din2)
    wv3 = jax.random.normal(kv3, (din2, dout2), dtype=jnp.float32) / math.sqrt(din2)

    out3 = jax.block_until_ready(self_attention_v1(x3, wq3, wk3, wv3))
    ref3 = _reference(x3, wq3, wk3, wv3)
    assert out3.shape == (s3, dout2)
    assert jnp.allclose(out3, ref3, atol=1e-2, rtol=1e-2), "masked-path mismatch"

    print("KERNEL_OK")
</pallas_src>

<mosaic_0001>
module attributes {stable_mosaic.version = 11 : i64} {
  func.func @_attn_single_block_kernel(%arg0: memref<8x32xf32, #tpu.memory_space<vmem>>, %arg1: memref<32x16xf32, #tpu.memory_space<vmem>>, %arg2: memref<32x16xf32, #tpu.memory_space<vmem>>, %arg3: memref<32x16xf32, #tpu.memory_space<vmem>>, %arg4: memref<8x16xf32, #tpu.memory_space<vmem>>) attributes {dimension_semantics = [], scalar_prefetch = 0 : i64, scratch_operands = 0 : i64, tpu.core_type = #tpu.core_type<tc>} {
    %c0 = arith.constant 0 : index
    %c0_0 = arith.constant 0 : index
    %0 = vector.load %arg0[%c0, %c0_0] : memref<8x32xf32, #tpu.memory_space<vmem>>, vector<8x32xf32>
    %c0_1 = arith.constant 0 : index
    %c0_2 = arith.constant 0 : index
    %1 = vector.load %arg1[%c0_1, %c0_2] : memref<32x16xf32, #tpu.memory_space<vmem>>, vector<32x16xf32>
    %cst = arith.constant dense<0.000000e+00> : vector<8x16xf32>
    %2 = tpu.matmul %0, %1, %cst {dimension_numbers = #tpu.dot_dimension_numbers<[1], [0], [0], [1], [0, 0, 1, 1], [], []>} : vector<8x32xf32>, vector<32x16xf32>, vector<8x16xf32> -> vector<8x16xf32>
    %cst_3 = arith.constant 2.500000e-01 : f32
    %3 = vector.broadcast %cst_3 : f32 to vector<8x16xf32>
    %4 = arith.mulf %2, %3 : vector<8x16xf32>
    %c0_4 = arith.constant 0 : index
    %c0_5 = arith.constant 0 : index
    %5 = vector.load %arg2[%c0_4, %c0_5] : memref<32x16xf32, #tpu.memory_space<vmem>>, vector<32x16xf32>
    %cst_6 = arith.constant dense<0.000000e+00> : vector<8x16xf32>
    %6 = tpu.matmul %0, %5, %cst_6 {dimension_numbers = #tpu.dot_dimension_numbers<[1], [0], [0], [1], [0, 0, 1, 1], [], []>} : vector<8x32xf32>, vector<32x16xf32>, vector<8x16xf32> -> vector<8x16xf32>
    %c0_7 = arith.constant 0 : index
    %c0_8 = arith.constant 0 : index
    %7 = vector.load %arg3[%c0_7, %c0_8] : memref<32x16xf32, #tpu.memory_space<vmem>>, vector<32x16xf32>
    %cst_9 = arith.constant dense<0.000000e+00> : vector<8x16xf32>
    %8 = tpu.matmul %0, %7, %cst_9 {dimension_numbers = #tpu.dot_dimension_numbers<[1], [0], [0], [1], [0, 0, 1, 1], [], []>} : vector<8x32xf32>, vector<32x16xf32>, vector<8x16xf32> -> vector<8x16xf32>
    %cst_10 = arith.constant dense<0.000000e+00> : vector<8x8xf32>
    %9 = tpu.matmul %4, %6, %cst_10 {dimension_numbers = #tpu.dot_dimension_numbers<[1], [1], [0], [0], [0, 0, 1, 0], [], []>} : vector<8x16xf32>, vector<8x16xf32>, vector<8x8xf32> -> vector<8x8xf32>
    %cst_11 = arith.constant dense<0xFF800000> : vector<8xf32>
    %10 = vector.multi_reduction <maximumf>, %9, %cst_11 [1] : vector<8x8xf32> to vector<8xf32>
    %11 = vector.shape_cast %10 : vector<8xf32> to vector<8x1xf32>
    %12 = vector.broadcast %11 : vector<8x1xf32> to vector<8x8xf32>
    %13 = arith.subf %9, %12 : vector<8x8xf32>
    %14 = math.exp %13 : vector<8x8xf32>
    %cst_12 = arith.constant dense<0.000000e+00> : vector<8xf32>
    %15 = vector.multi_reduction <add>, %14, %cst_12 [1] : vector<8x8xf32> to vector<8xf32>
    %16 = vector.shape_cast %15 : vector<8xf32> to vector<8x1xf32>
    %cst_13 = arith.constant dense<0.000000e+00> : vector<8x16xf32>
    %17 = tpu.matmul %14, %8, %cst_13 {dimension_numbers = #tpu.dot_dimension_numbers<[1], [0], [0], [1], [0, 0, 1, 1], [], []>} : vector<8x8xf32>, vector<8x16xf32>, vector<8x16xf32> -> vector<8x16xf32>
    %18 = vector.broadcast %16 : vector<8x1xf32> to vector<8x16xf32>
    %19 = arith.divf %17, %18 : vector<8x16xf32>
    %c0_14 = arith.constant 0 : index
    %c0_15 = arith.constant 0 : index
    %20 = vector.load %arg4[%c0_14, %c0_15] : memref<8x16xf32, #tpu.memory_space<vmem>>, vector<8x16xf32>
    tpu.vector_store %arg4[%c0_14, %c0_15], %19 {strides = array<i32>} : memref<8x16xf32, #tpu.memory_space<vmem>>, vector<8x16xf32>,
    return
  }
}

</mosaic_0001>

<llo_original>
// kernel: tpu_custom_call.1
$region0: #{tpu_custom_call.1}
  #allocation0 [shape = 'u32[]', space=smem, size = 0x4, offset = 0x4, fixed_abs, tag = 'smem constant byte address 0x4 - core index']
  #allocation1 [shape = 'u32[144,128]{1,0:T(1,128)}', space=vmem, size = 0x12000, scoped, tag = 'internal scratch']
  %s0 = inlined_call_operand.vmem [shape: f32[8,32], index: 0, kind: input, shape index: {}]
  %s1 = inlined_call_operand.vmem [shape: f32[32,16], index: 1, kind: input, shape index: {}]
  %s2 = inlined_call_operand.vmem [shape: f32[32,16], index: 2, kind: input, shape index: {}]
  %s3 = inlined_call_operand.vmem [shape: f32[32,16], index: 3, kind: input, shape index: {}]
  %s4 = inlined_call_operand.hbm [shape: f32[8,16], index: 4, kind: output, shape index: {}]
  %s5 = sld [smem:[#allocation0]]
  $region26: #{tpu_custom_call.1} parent=0
    _
  %s7 = ssub.s32 1, %s5
  %s8 = scalar_select 0, %s7, %s5
  $region1: #{tpu_custom_call.1} parent=0
    #allocation2 [shape = 'u8[4096]{0}', space=vmem, size = 0x1000, scoped, tag = 'output window, operand 0, single buffered']
    #allocation3 [shape = 's32[1]{0}', space=sflag, size = 0x4, scoped, tag = 'scoped memory for tpu_custom_call.1']
    %9 = vsyncpa [#allocation3], 0
    // Predicated region
    $region2: #{tpu_custom_call.1} parent=1 // pred_check
      _
    $region3: #{tpu_custom_call.1} parent=1 // pred_check_branch
      %11 = sbr.rel (0) target = $region5
    $region4: #{tpu_custom_call.1} parent=1 // pred_region
      _
    $region5: #{tpu_custom_call.1} parent=1 // pred_fallthru
      _
    // Predicated region
    $region6: #{tpu_custom_call.1} parent=1 // pred_check
      _
    $region7: #{tpu_custom_call.1} parent=1 // pred_check_branch
      %13 = sbr.rel (0) target = $region9
    $region8: #{tpu_custom_call.1} parent=1 // pred_region
      _
    $region9: #{tpu_custom_call.1} parent=1 // pred_fallthru
      _
    // Predicated region
    $region10: #{tpu_custom_call.1} parent=1 // pred_check
      _
    $region11: #{tpu_custom_call.1} parent=1 // pred_check_branch
      %15 = sbr.rel (0) target = $region13
    $region12: #{tpu_custom_call.1} parent=1 // pred_region
      _
    $region13: #{tpu_custom_call.1} parent=1 // pred_fallthru
      _
    // Predicated region
    $region14: #{tpu_custom_call.1} parent=1 // pred_check
      _
    $region15: #{tpu_custom_call.1} parent=1 // pred_check_branch
      %17 = sbr.rel (0) target = $region17
    $region16: #{tpu_custom_call.1} parent=1 // pred_region
      _
    $region17: #{tpu_custom_call.1} parent=1 // pred_fallthru
      _
    %v18 = vld [vmem:[%s0] sm:$0xff]
    %v19 = vld [vmem:[%s1] sm:$0xff]
    %v20 = vld [vmem:[%s1 + $0x8] sm:$0xff]
    %v21 = vld [vmem:[%s1 + $0x10] sm:$0xff]
    %v22 = vld [vmem:[%s1 + $0x18] sm:$0xff]
    %vm23 = vcmask 261120
    %v25 = vsel %vm23, %v18, 0
    %27 = vmatprep.subr.mxu0 0.0
    %28 = vmatpush1.msra.mxu0 %v19
    %29 = vmatprep.subr.mxu0 0.0
    %30 = vmatpush1.msra.mxu0 %v20
    %31 = vmatprep.subr.mxu0 0.0
    %32 = vmatpush1.msra.mxu0 %v21
    %33 = vmatprep.subr.mxu0 0.0
    %34 = vmatpush1.msra.mxu0 %v22
    %35 = vmatprep.subr.mxu0 0.0
    %36 = vmatpush1.msra.mxu0 0.0
    %37 = vmatprep.subr.mxu0 0.0
    %38 = vmatpush1.msra.mxu0 0.0
    %39 = vmatprep.subr.mxu0 0.0
    %40 = vmatpush1.msra.mxu0 0.0
    %41 = vmatprep.subr.mxu0 0.0
    %42 = vmatpush1.msra.mxu0 0.0
    %43 = vmatprep.subr.mxu0 0.0
    %44 = vmatpush1.msra.mxu0 0.0
    %45 = vmatprep.subr.mxu0 0.0
    %46 = vmatpush1.msra.mxu0 0.0
    %47 = vmatprep.subr.mxu0 0.0
    %48 = vmatpush1.msra.mxu0 0.0
    %49 = vmatprep.subr.mxu0 0.0
    %50 = vmatpush1.msra.mxu0 0.0
    %51 = vmatprep.subr.mxu0 0.0
    %52 = vmatpush1.msra.mxu0 0.0
    %53 = vmatprep.subr.mxu0 0.0
    %54 = vmatpush1.msra.mxu0 0.0
    %55 = vmatprep.subr.mxu0 0.0
    %56 = vmatpush1.msra.mxu0 0.0
    %57 = vmatprep.subr.mxu0 0.0
    %58 = vmatpush1.msra.mxu0 0.0
    %59 = vmatprep.subr.mxu0 0.0
    %60 = vmatpush1.msra.mxu0 0.0
    %61 = vmatprep.subr.mxu0 0.0
    %62 = vmatpush1.msra.mxu0 0.0
    %63 = vmatprep.subr.mxu0 0.0
    %64 = vmatpush1.msra.mxu0 0.0
    %65 = vmatprep.subr.mxu0 0.0
    %66 = vmatpush1.msra.mxu0 0.0
    %67 = vmatprep.subr.mxu0 0.0
    %68 = vmatpush1.msra.mxu0 0.0
    %69 = vmatprep.subr.mxu0 0.0
    %70 = vmatpush1.msra.mxu0 0.0
    %71 = vmatprep.subr.mxu0 0.0
    %72 = vmatpush1.msra.mxu0 0.0
    %73 = vmatprep.subr.mxu0 0.0
    %74 = vmatpush1.msra.mxu0 0.0
    %75 = vmatprep.subr.mxu0 0.0
    %76 = vmatpush1.msra.mxu0 0.0
    %77 = vmatprep.subr.mxu0 0.0
    %78 = vmatpush1.msra.mxu0 0.0
    %79 = vmatprep.subr.mxu0 0.0
    %80 = vmatpush1.msra.mxu0 0.0
    %81 = vmatprep.subr.mxu0 0.0
    %82 = vmatpush1.msra.mxu0 0.0
    %83 = vmatprep.subr.mxu0 0.0
    %84 = vmatpush1.msra.mxu0 0.0
    %85 = vmatprep.subr.mxu0 0.0
    %86 = vmatpush1.msra.mxu0 0.0
    %87 = vmatprep.subr.mxu0 0.0
    %88 = vmatpush1.msra.mxu0 0.0
    %89 = vmatprep.subr.mxu0 0.0
    %90 = vmatpush1.msra.mxu0 0.0
    %91 = vmatprep.mubr.f32.mxu0 0.0
    %92 = vmatmul.mubr.f32.gmra.mrb[0].mxu0 %v25
    %v93 = vpop.f32.mrb[0].mxu0
    %v94 = vadd.f32 0.0, %v93
    %v95 = vpop.f32.mrb[0].mxu0
    %96 = vdwg.mxu0
    %v97 = vmul.f32 %v94, 0.25
    %v98 = vld [vmem:[%s2] sm:$0xff]
    %v99 = vld [vmem:[%s2 + $0x8] sm:$0xff]
    %v100 = vld [vmem:[%s2 + $0x10] sm:$0xff]
    %v101 = vld [vmem:[%s2 + $0x18] sm:$0xff]
    %102 = vmatprep.subr.mxu0 0.0
    %103 = vmatpush1.msra.mxu0 %v98
    %104 = vmatprep.subr.mxu0 0.0
    %105 = vmatpush1.msra.mxu0 %v99
    %106 = vmatprep.subr.mxu0 0.0
    %107 = vmatpush1.msra.mxu0 %v100
    %108 = vmatprep.subr.mxu0 0.0
    %109 = vmatpush1.msra.mxu0 %v101
    %110 = vmatprep.subr.mxu0 0.0
    %111 = vmatpush1.msra.mxu0 0.0
    %112 = vmatprep.subr.mxu0 0.0
    %113 = vmatpush1.msra.mxu0 0.0
    %114 = vmatprep.subr.mxu0 0.0
    %115 = vmatpush1.msra.mxu0 0.0
    %116 = vmatprep.subr.mxu0 0.0
    %117 = vmatpush1.msra.mxu0 0.0
    %118 = vmatprep.subr.mxu0 0.0
    %119 = vmatpush1.msra.mxu0 0.0
    %120 = vmatprep.subr.mxu0 0.0
    %121 = vmatpush1.msra.mxu0 0.0
    %122 = vmatprep.subr.mxu0 0.0
    %123 = vmatpush1.msra.mxu0 0.0
    %124 = vmatprep.subr.mxu0 0.0
    %125 = vmatpush1.msra.mxu0 0.0
    %126 = vmatprep.subr.mxu0 0.0
    %127 = vmatpush1.msra.mxu0 0.0
    %128 = vmatprep.subr.mxu0 0.0
    %129 = vmatpush1.msra.mxu0 0.0
    %130 = vmatprep.subr.mxu0 0.0
    %131 = vmatpush1.msra.mxu0 0.0
    %132 = vmatprep.subr.mxu0 0.0
    %133 = vmatpush1.msra.mxu0 0.0
    %134 = vmatprep.subr.mxu0 0.0
    %135 = vmatpush1.msra.mxu0 0.0
    %136 = vmatprep.subr.mxu0 0.0
    %137 = vmatpush1.msra.mxu0 0.0
    %138 = vmatprep.subr.mxu0 0.0
    %139 = vmatpush1.msra.mxu0 0.0
    %140 = vmatprep.subr.mxu0 0.0
    %141 = vmatpush1.msra.mxu0 0.0
    %142 = vmatprep.subr.mxu0 0.0
    %143 = vmatpush1.msra.mxu0 0.0
    %144 = vmatprep.subr.mxu0 0.0
    %145 = vmatpush1.msra.mxu0 0.0
    %146 = vmatprep.subr.mxu0 0.0
    %147 = vmatpush1.msra.mxu0 0.0
    %148 = vmatprep.subr.mxu0 0.0
    %149 = vmatpush1.msra.mxu0 0.0
    %150 = vmatprep.subr.mxu0 0.0
    %151 = vmatpush1.msra.mxu0 0.0
    %152 = vmatprep.subr.mxu0 0.0
    %153 = vmatpush1.msra.mxu0 0.0
    %154 = vmatprep.subr.mxu0 0.0
    %155 = vmatpush1.msra.mxu0 0.0
    %156 = vmatprep.subr.mxu0 0.0
    %157 = vmatpush1.msra.mxu0 0.0
    %158 = vmatprep.subr.mxu0 0.0
    %159 = vmatpush1.msra.mxu0 0.0
    %160 = vmatprep.subr.mxu0 0.0
    %161 = vmatpush1.msra.mxu0 0.0
    %162 = vmatprep.subr.mxu0 0.0
    %163 = vmatpush1.msra.mxu0 0.0
    %164 = vmatprep.subr.mxu0 0.0
    %165 = vmatpush1.msra.mxu0 0.0
    %166 = vmatprep.mubr.f32.mxu0 0.0
    %167 = vmatmul.mubr.f32.gmra.mrb[0].mxu0 %v25
    %v168 = vpop.f32.mrb[0].mxu0
    %v169 = vadd.f32 0.0, %v168
    %v170 = vpop.f32.mrb[0].mxu0
    %171 = vdwg.mxu0
    %v172 = vld [vmem:[%s3] sm:$0xff]
    %v173 = vld [vmem:[%s3 + $0x8] sm:$0xff]
    %v174 = vld [vmem:[%s3 + $0x10] sm:$0xff]
    %v175 = vld [vmem:[%s3 + $0x18] sm:$0xff]
    %176 = vmatprep.subr.mxu0 0.0
    %177 = vmatpush1.msra.mxu0 %v172
    %178 = vmatprep.subr.mxu0 0.0
    %179 = vmatpush1.msra.mxu0 %v173
    %180 = vmatprep.subr.mxu0 0.0
    %181 = vmatpush1.msra.mxu0 %v174
    %182 = vmatprep.subr.mxu0 0.0
    %183 = vmatpush1.msra.mxu0 %v175
    %184 = vmatprep.subr.mxu0 0.0
    %185 = vmatpush1.msra.mxu0 0.0
    %186 = vmatprep.subr.mxu0 0.0
    %187 = vmatpush1.msra.mxu0 0.0
    %188 = vmatprep.subr.mxu0 0.0
    %189 = vmatpush1.msra.mxu0 0.0
    %190 = vmatprep.subr.mxu0 0.0
    %191 = vmatpush1.msra.mxu0 0.0
    %192 = vmatprep.subr.mxu0 0.0
    %193 = vmatpush1.msra.mxu0 0.0
    %194 = vmatprep.subr.mxu0 0.0
    %195 = vmatpush1.msra.mxu0 0.0
    %196 = vmatprep.subr.mxu0 0.0
    %197 = vmatpush1.msra.mxu0 0.0
    %198 = vmatprep.subr.mxu0 0.0
    %199 = vmatpush1.msra.mxu0 0.0
    %200 = vmatprep.subr.mxu0 0.0
    %201 = vmatpush1.msra.mxu0 0.0
    %202 = vmatprep.subr.mxu0 0.0
    %203 = vmatpush1.msra.mxu0 0.0
    %204 = vmatprep.subr.mxu0 0.0
    %205 = vmatpush1.msra.mxu0 0.0
    %206 = vmatprep.subr.mxu0 0.0
    %207 = vmatpush1.msra.mxu0 0.0
    %208 = vmatprep.subr.mxu0 0.0
    %209 = vmatpush1.msra.mxu0 0.0
    %210 = vmatprep.subr.mxu0 0.0
    %211 = vmatpush1.msra.mxu0 0.0
    %212 = vmatprep.subr.mxu0 0.0
    %213 = vmatpush1.msra.mxu0 0.0
    %214 = vmatprep.subr.mxu0 0.0
    %215 = vmatpush1.msra.mxu0 0.0
    %216 = vmatprep.subr.mxu0 0.0
    %217 = vmatpush1.msra.mxu0 0.0
    %218 = vmatprep.subr.mxu0 0.0
    %219 = vmatpush1.msra.mxu0 0.0
    %220 = vmatprep.subr.mxu0 0.0
    %221 = vmatpush1.msra.mxu0 0.0
    %222 = vmatprep.subr.mxu0 0.0
    %223 = vmatpush1.msra.mxu0 0.0
    %224 = vmatprep.subr.mxu0 0.0
    %225 = vmatpush1.msra.mxu0 0.0
    %226 = vmatprep.subr.mxu0 0.0
    %227 = vmatpush1.msra.mxu0 0.0
    %228 = vmatprep.subr.mxu0 0.0
    %229 = vmatpush1.msra.mxu0 0.0
    %230 = vmatprep.subr.mxu0 0.0
    %231 = vmatpush1.msra.mxu0 0.0
    %232 = vmatprep.subr.mxu0 0.0
    %233 = vmatpush1.msra.mxu0 0.0
    %234 = vmatprep.subr.mxu0 0.0
    %235 = vmatpush1.msra.mxu0 0.0
    %236 = vmatprep.subr.mxu0 0.0
    %237 = vmatpush1.msra.mxu0 0.0
    %238 = vmatprep.subr.mxu0 0.0
    %239 = vmatpush1.msra.mxu0 0.0
    %240 = vmatprep.mubr.f32.mxu0 0.0
    %241 = vmatmul.mubr.f32.gmra.mrb[0].mxu0 %v25
    %v242 = vpop.f32.mrb[0].mxu0
    %v243 = vadd.f32 0.0, %v242
    %v244 = vpop.f32.mrb[0].mxu0
    %245 = vdwg.mxu0
    %vm246 = vcmask 130048
    %v248 = vsel %vm246, %v97, 0
    %v251 = vsel %vm246, %v169, 0
    %253 = vmatprep.subr.mxu0 0.0
    %254 = vmatpush1.xpose.msra.mxu0 %v251
    %255 = vmatprep.subr.mxu0 0.0
    %256 = vmatpush1.xpose.msra.mxu0 0.0
    %257 = vmatprep.subr.mxu0 0.0
    %258 = vmatpush1.xpose.msra.mxu0 0.0
    %259 = vmatprep.subr.mxu0 0.0
    %260 = vmatpush1.xpose.msra.mxu0 0.0
    %261 = vmatprep.subr.mxu0 0.0
    %262 = vmatpush1.xpose.msra.mxu0 0.0
    %263 = vmatprep.subr.mxu0 0.0
    %264 = vmatpush1.xpose.msra.mxu0 0.0
    %265 = vmatprep.subr.mxu0 0.0
    %266 = vmatpush1.xpose.msra.mxu0 0.0
    %267 = vmatprep.subr.mxu0 0.0
    %268 = vmatpush1.xpose.msra.mxu0 0.0
    %269 = vmatprep.subr.mxu0 0.0
    %270 = vmatpush1.xpose.msra.mxu0 0.0
    %271 = vmatprep.subr.mxu0 0.0
    %272 = vmatpush1.xpose.msra.mxu0 0.0
    %273 = vmatprep.subr.mxu0 0.0
    %274 = vmatpush1.xpose.msra.mxu0 0.0
    %275 = vmatprep.subr.mxu0 0.0
    %276 = vmatpush1.xpose.msra.mxu0 0.0
    %277 = vmatprep.subr.mxu0 0.0
    %278 = vmatpush1.xpose.msra.mxu0 0.0
    %279 = vmatprep.subr.mxu0 0.0
    %280 = vmatpush1.xpose.msra.mxu0 0.0
    %281 = vmatprep.subr.mxu0 0.0
    %282 = vmatpush1.xpose.msra.mxu0 0.0
    %283 = vmatprep.subr.mxu0 0.0
    %284 = vmatpush1.xpose.msra.mxu0 0.0
    %285 = vmatprep.subr.mxu0 0.0
    %286 = vmatpush1.xpose.msra.mxu0 0.0
    %287 = vmatprep.subr.mxu0 0.0
    %288 = vmatpush1.xpose.msra.mxu0 0.0
    %289 = vmatprep.subr.mxu0 0.0
    %290 = vmatpush1.xpose.msra.mxu0 0.0
    %291 = vmatprep.subr.mxu0 0.0
    %292 = vmatpush1.xpose.msra.mxu0 0.0
    %293 = vmatprep.subr.mxu0 0.0
    %294 = vmatpush1.xpose.msra.mxu0 0.0
    %295 = vmatprep.subr.mxu0 0.0
    %296 = vmatpush1.xpose.msra.mxu0 0.0
    %297 = vmatprep.subr.mxu0 0.0
    %298 = vmatpush1.xpose.msra.mxu0 0.0
    %299 = vmatprep.subr.mxu0 0.0
    %300 = vmatpush1.xpose.msra.mxu0 0.0
    %301 = vmatprep.subr.mxu0 0.0
    %302 = vmatpush1.xpose.msra.mxu0 0.0
    %303 = vmatprep.subr.mxu0 0.0
    %304 = vmatpush1.xpose.msra.mxu0 0.0
    %305 = vmatprep.subr.mxu0 0.0
    %306 = vmatpush1.xpose.msra.mxu0 0.0
    %307 = vmatprep.subr.mxu0 0.0
    %308 = vmatpush1.xpose.msra.mxu0 0.0
    %309 = vmatprep.subr.mxu0 0.0
    %310 = vmatpush1.xpose.msra.mxu0 0.0
    %311 = vmatprep.subr.mxu0 0.0
    %312 = vmatpush1.xpose.msra.mxu0 0.0
    %313 = vmatprep.subr.mxu0 0.0
    %314 = vmatpush1.xpose.msra.mxu0 0.0
    %315 = vmatprep.subr.mxu0 0.0
    %316 = vmatpush1.xpose.msra.mxu0 0.0
    %317 = vmatprep.mubr.f32.mxu0 0.0
    %318 = vmatmul.mubr.f32.gmra.mrb[0].mxu0 %v248
    %v319 = vpop.f32.mrb[0].mxu0
    %v320 = vadd.f32 0.0, %v319
    %v321 = vpop.f32.mrb[0].mxu0
    %322 = vdwg.mxu0
    %vm323 = vcmask 64512
    %v324 = vsel %vm323, %v320, -inf
    %325 = vmax.xlane.f32.xlu0 %v324
    %v326 = vpop.xlane.xlu0 %325
    %v327 = vsub.f32 %v320, %v326
    %v328 = vmul.f32 %v327, 1.442695
    %v329 = vpow.pop %v328
    %v330 = vsel %vm323, %v329, 0.0
    %331 = vadd.xlane.f32.xlu0 %v330
    %v332 = vpop.xlane.xlu0 %331
    %v334 = vsel %vm323, %v329, 0
    %336 = vmatprep.subr.mxu0 0.0
    %337 = vmatpush1.msra.mxu0 %v243
    %338 = vmatprep.subr.mxu0 0.0
    %339 = vmatpush1.msra.mxu0 0.0
    %340 = vmatprep.subr.mxu0 0.0
    %341 = vmatpush1.msra.mxu0 0.0
    %342 = vmatprep.subr.mxu0 0.0
    %343 = vmatpush1.msra.mxu0 0.0
    %344 = vmatprep.subr.mxu0 0.0
    %345 = vmatpush1.msra.mxu0 0.0
    %346 = vmatprep.subr.mxu0 0.0
    %347 = vmatpush1.msra.mxu0 0.0
    %348 = vmatprep.subr.mxu0 0.0
    %349 = vmatpush1.msra.mxu0 0.0
    %350 = vmatprep.subr.mxu0 0.0
    %351 = vmatpush1.msra.mxu0 0.0
    %352 = vmatprep.subr.mxu0 0.0
    %353 = vmatpush1.msra.mxu0 0.0
    %354 = vmatprep.subr.mxu0 0.0
    %355 = vmatpush1.msra.mxu0 0.0
    %356 = vmatprep.subr.mxu0 0.0
    %357 = vmatpush1.msra.mxu0 0.0
    %358 = vmatprep.subr.mxu0 0.0
    %359 = vmatpush1.msra.mxu0 0.0
    %360 = vmatprep.subr.mxu0 0.0
    %361 = vmatpush1.msra.mxu0 0.0
    %362 = vmatprep.subr.mxu0 0.0
    %363 = vmatpush1.msra.mxu0 0.0
    %364 = vmatprep.subr.mxu0 0.0
    %365 = vmatpush1.msra.mxu0 0.0
    %366 = vmatprep.subr.mxu0 0.0
    %367 = vmatpush1.msra.mxu0 0.0
    %368 = vmatprep.subr.mxu0 0.0
    %369 = vmatpush1.msra.mxu0 0.0
    %370 = vmatprep.subr.mxu0 0.0
    %371 = vmatpush1.msra.mxu0 0.0
    %372 = vmatprep.subr.mxu0 0.0
    %373 = vmatpush1.msra.mxu0 0.0
    %374 = vmatprep.subr.mxu0 0.0
    %375 = vmatpush1.msra.mxu0 0.0
    %376 = vmatprep.subr.mxu0 0.0
    %377 = vmatpush1.msra.mxu0 0.0
    %378 = vmatprep.subr.mxu0 0.0
    %379 = vmatpush1.msra.mxu0 0.0
    %380 = vmatprep.subr.mxu0 0.0
    %381 = vmatpush1.msra.mxu0 0.0
    %382 = vmatprep.subr.mxu0 0.0
    %383 = vmatpush1.msra.mxu0 0.0
    %384 = vmatprep.subr.mxu0 0.0
    %385 = vmatpush1.msra.mxu0 0.0
    %386 = vmatprep.subr.mxu0 0.0
    %387 = vmatpush1.msra.mxu0 0.0
    %388 = vmatprep.subr.mxu0 0.0
    %389 = vmatpush1.msra.mxu0 0.0
    %390 = vmatprep.subr.mxu0 0.0
    %391 = vmatpush1.msra.mxu0 0.0
    %392 = vmatprep.subr.mxu0 0.0
    %393 = vmatpush1.msra.mxu0 0.0
    %394 = vmatprep.subr.mxu0 0.0
    %395 = vmatpush1.msra.mxu0 0.0
    %396 = vmatprep.subr.mxu0 0.0
    %397 = vmatpush1.msra.mxu0 0.0
    %398 = vmatprep.subr.mxu0 0.0
    %399 = vmatpush1.msra.mxu0 0.0
    %400 = vmatprep.mubr.f32.mxu0 0.0
    %401 = vmatmul.mubr.f32.gmra.mrb[0].mxu0 %v334
    %v402 = vpop.f32.mrb[0].mxu0
    %v403 = vadd.f32 0.0, %v402
    %v404 = vpop.f32.mrb[0].mxu0
    %405 = vdwg.mxu0
    %v406 = vrcp.pop %v332
    %v407 = vmul.f32 %v403, %v406
    %408 = vst.msk [vmem:[#allocation2] sm:$0xff] %vm246, %v407
    // Predicated region
    $region18: #{tpu_custom_call.1} parent=1 // pred_check
      _
    $region19: #{tpu_custom_call.1} parent=1 // pred_check_branch
      %410 = sbr.rel (0) target = $region21
    $region20: #{tpu_custom_call.1} parent=1 // pred_region
      %s412 = ssub.s32 128, 128
      %413 = vsyncadd [#allocation3], %s412
      %s415 = sshll.u32 [#allocation2], 4
      %s416 = int_to_ptr.vmem [resolvable:$true] %s415
      %418 = dma.vmem_to_hbm [thread:$0]  %s416, 128, %s4, [#allocation3]
    $region21: #{tpu_custom_call.1} parent=1 // pred_fallthru
      _
    // Predicated region
    $region22: #{tpu_custom_call.1} parent=1 // pred_check
      _
    $region23: #{tpu_custom_call.1} parent=1 // pred_check_branch
      %420 = sbr.rel (0) target = $region25
    $region24: #{tpu_custom_call.1} parent=1 // pred_region
      %421 = dma.done [#allocation3], 128
    $region25: #{tpu_custom_call.1} parent=1 // pred_fallthru
      _
    %422 = vsyncpa [#allocation3], 1

</llo_original>
